<compile_context>
chip_gen: v7x
topology: tpu7x:2x2x1
jax: 0.10.0
libtpu: 0.0.40
codegen_flags: <defaults>
</compile_context>

<pallas_src>
import functools

import jax
import jax.numpy as jnp
from jax.experimental import pallas as pl
from jax.experimental.pallas import tpu as pltpu


def user_embedding_kernel(x_ref, w1t_ref, b1t_ref, w2t_ref, b2t_ref,
                          w3t_ref, b3t_ref, o_ref):
    # x_ref: (tm, in) f32, batch on sublanes (as stored in HBM).
    # All activations below are (features, tm): batch on lanes -> lane-dense
    # tanh / bias-add vregs.
    x = x_ref[...]

    # Layer 1: h1^T = tanh(w1^T x^T + b1^T). NT matmul (contract the in_size
    # dim of both operands) so the MXU handles the orientation change.
    h1 = jnp.tanh(
        jax.lax.dot_general(
            w1t_ref[...], x,
            dimension_numbers=(((1,), (1,)), ((), ())),
            preferred_element_type=jnp.float32,
        )
        + b1t_ref[...]
    )                                                       # (hid, tm)
    # dropout1 -> identity (eval mode)

    # Layer 2: h2^T = tanh(w2^T h1^T + b2^T).
    h2 = jnp.tanh(
        jnp.dot(w2t_ref[...], h1, preferred_element_type=jnp.float32)
        + b2t_ref[...]
    )                                                       # (hid, tm)
    # dropout2 -> identity (eval mode)

    # Output layer: out^T = w3^T h2^T + b3^T, stored as (out_size, tm).
    o_ref[...] = (
        jnp.dot(w3t_ref[...], h2, preferred_element_type=jnp.float32)
        + b3t_ref[...]
    ).astype(o_ref.dtype)


@functools.partial(jax.jit, static_argnames=("block_m",))
def user_embedding_forward(x, w1, b1, w2, b2, w3, b3, *, block_m=4096):
    """x: [B, in]; w_i: [in_i, out_i]; b_i: [1, out_i]. Returns [B, out] (f32)."""
    B, in_size = x.shape
    hid = w1.shape[1]
    out_size = w3.shape[1]

    # Tiny one-time transposes so the kernel computes in (features, batch) space.
    w1t, b1t = w1.T, b1.T          # (hid, in), (hid, 1)
    w2t, b2t = w2.T, b2.T          # (hid, hid), (hid, 1)
    w3t, b3t = w3.T, b3.T          # (out, hid), (out, 1)

    # Batch tile: one block for small B; otherwise a multiple of 128 (lane dim
    # of the transposed output), capped at block_m and at ~B/2 so the parallel
    # grid axis has >=2 steps (v7x megacore). No batch padding is materialized:
    # the ragged last block is masked by Pallas.
    if B < 256:
        tm = B
    else:
        half = pl.cdiv(B, 2)
        tm = min(block_m, ((half + 127) // 128) * 128)
    grid_m = pl.cdiv(B, tm)

    param_bytes = 4 * (in_size * hid + hid + hid * hid + hid
                       + hid * out_size + out_size)
    cost = pl.CostEstimate(
        flops=2 * B * (in_size * hid + hid * hid + hid * out_size),
        transcendentals=2 * B * hid,
        bytes_accessed=4 * B * (in_size + out_size) + param_bytes,
    )

    out_t = pl.pallas_call(
        user_embedding_kernel,
        out_shape=jax.ShapeDtypeStruct((out_size, B), jnp.float32),
        grid=(grid_m,),
        in_specs=[
            pl.BlockSpec((tm, in_size), lambda i: (i, 0)),     # x: tiled over batch
            pl.BlockSpec((hid, in_size), lambda i: (0, 0)),    # params: VMEM-resident
            pl.BlockSpec((hid, 1), lambda i: (0, 0)),
            pl.BlockSpec((hid, hid), lambda i: (0, 0)),
            pl.BlockSpec((hid, 1), lambda i: (0, 0)),
            pl.BlockSpec((out_size, hid), lambda i: (0, 0)),
            pl.BlockSpec((out_size, 1), lambda i: (0, 0)),
        ],
        out_specs=pl.BlockSpec((out_size, tm), lambda i: (0, i)),
        compiler_params=pltpu.CompilerParams(
            dimension_semantics=("parallel",)),
        cost_estimate=cost,
    )(x, w1t, b1t, w2t, b2t, w3t, b3t)

    # Small (out_size, B) -> (B, out_size) transpose back to the module's layout.
    return out_t.T


def init_linear_params(key, in_features, out_features):
    # PyTorch nn.Linear default init: U(-1/sqrt(in), 1/sqrt(in)) for W and b.
    kw, kb = jax.random.split(key)
    bound = 1.0 / jnp.sqrt(jnp.float32(in_features))
    w = jax.random.uniform(kw, (in_features, out_features), jnp.float32, -bound, bound)
    b = jax.random.uniform(kb, (1, out_features), jnp.float32, -bound, bound)
    return w, b


def _reference(x, w1, b1, w2, b2, w3, b3):
    hp = jax.lax.Precision.HIGHEST
    h = jnp.tanh(jnp.dot(x, w1, precision=hp) + b1)
    h = jnp.tanh(jnp.dot(h, w2, precision=hp) + b2)
    return jnp.dot(h, w3, precision=hp) + b3


if __name__ == "__main__":
    input_size, hidden_size, output_size = 16, 32, 8
    batch = 8

    key = jax.random.PRNGKey(0)
    kx, k1, k2, k3 = jax.random.split(key, 4)

    x = jax.random.normal(kx, (batch, input_size), dtype=jnp.float32)
    w1, b1 = init_linear_params(k1, input_size, hidden_size)
    w2, b2 = init_linear_params(k2, hidden_size, hidden_size)
    w3, b3 = init_linear_params(k3, hidden_size, output_size)

    out = jax.block_until_ready(
        user_embedding_forward(x, w1, b1, w2, b2, w3, b3))
    ref = _reference(x, w1, b1, w2, b2, w3, b3)

    assert out.shape == (batch, output_size), out.shape
    assert jnp.allclose(out, ref, atol=2e-3, rtol=2e-3), \
        float(jnp.max(jnp.abs(out - ref)))

    # Also exercise the tiled path: grid of 2 steps with a ragged last block
    # (masked OOB writes), as used for production batch sizes.
    batch2 = 300
    x2 = jax.random.normal(jax.random.PRNGKey(1), (batch2, input_size),
                           dtype=jnp.float32)
    out2 = jax.block_until_ready(
        user_embedding_forward(x2, w1, b1, w2, b2, w3, b3))
    ref2 = _reference(x2, w1, b1, w2, b2, w3, b3)
    assert out2.shape == (batch2, output_size), out2.shape
    assert jnp.allclose(out2, ref2, atol=2e-3, rtol=2e-3), \
        float(jnp.max(jnp.abs(out2 - ref2)))

    print("KERNEL_OK")
</pallas_src>

<mosaic_0001>
module attributes {stable_mosaic.version = 11 : i64} {
  func.func @user_embedding_kernel(%arg0: i32, %arg1: memref<8x16xf32, #tpu.memory_space<vmem>>, %arg2: memref<32x16xf32, #tpu.memory_space<vmem>>, %arg3: memref<32x1xf32, #tpu.memory_space<vmem>>, %arg4: memref<32x32xf32, #tpu.memory_space<vmem>>, %arg5: memref<32x1xf32, #tpu.memory_space<vmem>>, %arg6: memref<8x32xf32, #tpu.memory_space<vmem>>, %arg7: memref<8x1xf32, #tpu.memory_space<vmem>>, %arg8: memref<8x8xf32, #tpu.memory_space<vmem>>) attributes {dimension_semantics = [#tpu.dimension_semantics<parallel>], iteration_bounds = array<i64: 1>, scalar_prefetch = 0 : i64, scratch_operands = 0 : i64, tpu.core_type = #tpu.core_type<tc>, window_params = [{transform_indices = @transform_0, window_bounds = array<i64: 8, 16>}, {pipeline_mode = #tpu.pipeline_mode<synchronous>, transform_indices = @transform_1, window_bounds = array<i64: 32, 16>}, {pipeline_mode = #tpu.pipeline_mode<synchronous>, transform_indices = @transform_2, window_bounds = array<i64: 32, 1>}, {pipeline_mode = #tpu.pipeline_mode<synchronous>, transform_indices = @transform_3, window_bounds = array<i64: 32, 32>}, {pipeline_mode = #tpu.pipeline_mode<synchronous>, transform_indices = @transform_4, window_bounds = array<i64: 32, 1>}, {pipeline_mode = #tpu.pipeline_mode<synchronous>, transform_indices = @transform_5, window_bounds = array<i64: 8, 32>}, {pipeline_mode = #tpu.pipeline_mode<synchronous>, transform_indices = @transform_6, window_bounds = array<i64: 8, 1>}, {transform_indices = @transform_7, window_bounds = array<i64: 8, 8>}]} {
    %c0 = arith.constant 0 : index
    %c0_0 = arith.constant 0 : index
    %0 = vector.load %arg1[%c0, %c0_0] : memref<8x16xf32, #tpu.memory_space<vmem>>, vector<8x16xf32>
    %c0_1 = arith.constant 0 : index
    %c0_2 = arith.constant 0 : index
    %1 = vector.load %arg2[%c0_1, %c0_2] : memref<32x16xf32, #tpu.memory_space<vmem>>, vector<32x16xf32>
    %cst = arith.constant dense<0.000000e+00> : vector<32x8xf32>
    %2 = tpu.matmul %1, %0, %cst {dimension_numbers = #tpu.dot_dimension_numbers<[1], [1], [0], [0], [0, 0, 1, 0], [], []>} : vector<32x16xf32>, vector<8x16xf32>, vector<32x8xf32> -> vector<32x8xf32>
    %c0_3 = arith.constant 0 : index
    %c0_4 = arith.constant 0 : index
    %3 = vector.load %arg3[%c0_3, %c0_4] : memref<32x1xf32, #tpu.memory_space<vmem>>, vector<32x1xf32>
    %4 = vector.broadcast %3 : vector<32x1xf32> to vector<32x8xf32>
    %5 = arith.addf %2, %4 : vector<32x8xf32>
    %6 = math.tanh %5 : vector<32x8xf32>
    %c0_5 = arith.constant 0 : index
    %c0_6 = arith.constant 0 : index
    %7 = vector.load %arg4[%c0_5, %c0_6] : memref<32x32xf32, #tpu.memory_space<vmem>>, vector<32x32xf32>
    %cst_7 = arith.constant dense<0.000000e+00> : vector<32x8xf32>
    %8 = tpu.matmul %7, %6, %cst_7 {dimension_numbers = #tpu.dot_dimension_numbers<[1], [0], [0], [1], [0, 0, 1, 1], [], []>} : vector<32x32xf32>, vector<32x8xf32>, vector<32x8xf32> -> vector<32x8xf32>
    %c0_8 = arith.constant 0 : index
    %c0_9 = arith.constant 0 : index
    %9 = vector.load %arg5[%c0_8, %c0_9] : memref<32x1xf32, #tpu.memory_space<vmem>>, vector<32x1xf32>
    %10 = vector.broadcast %9 : vector<32x1xf32> to vector<32x8xf32>
    %11 = arith.addf %8, %10 : vector<32x8xf32>
    %12 = math.tanh %11 : vector<32x8xf32>
    %c0_10 = arith.constant 0 : index
    %c0_11 = arith.constant 0 : index
    %13 = vector.load %arg6[%c0_10, %c0_11] : memref<8x32xf32, #tpu.memory_space<vmem>>, vector<8x32xf32>
    %cst_12 = arith.constant dense<0.000000e+00> : vector<8x8xf32>
    %14 = tpu.matmul %13, %12, %cst_12 {dimension_numbers = #tpu.dot_dimension_numbers<[1], [0], [0], [1], [0, 0, 1, 1], [], []>} : vector<8x32xf32>, vector<32x8xf32>, vector<8x8xf32> -> vector<8x8xf32>
    %c0_13 = arith.constant 0 : index
    %c0_14 = arith.constant 0 : index
    %15 = vector.load %arg7[%c0_13, %c0_14] : memref<8x1xf32, #tpu.memory_space<vmem>>, vector<8x1xf32>
    %16 = vector.broadcast %15 : vector<8x1xf32> to vector<8x8xf32>
    %17 = arith.addf %14, %16 : vector<8x8xf32>
    %c0_15 = arith.constant 0 : index
    %c0_16 = arith.constant 0 : index
    %18 = vector.load %arg8[%c0_15, %c0_16] : memref<8x8xf32, #tpu.memory_space<vmem>>, vector<8x8xf32>
    tpu.vector_store %arg8[%c0_15, %c0_16], %17 {strides = array<i32>} : memref<8x8xf32, #tpu.memory_space<vmem>>, vector<8x8xf32>,
    return
  }
  func.func @transform_0(%arg0: i32) -> (i32, i32) {
    %c0_i32 = arith.constant 0 : i32
    %c0_i32_0 = arith.constant 0 : i32
    return %arg0, %c0_i32 : i32, i32
  }
  func.func @transform_1(%arg0: i32) -> (i32, i32) {
    %c0_i32 = arith.constant 0 : i32
    %c0_i32_0 = arith.constant 0 : i32
    %c0_i32_1 = arith.constant 0 : i32
    return %c0_i32, %c0_i32_0 : i32, i32
  }
  func.func @transform_2(%arg0: i32) -> (i32, i32) {
    %c0_i32 = arith.constant 0 : i32
    %c0_i32_0 = arith.constant 0 : i32
    %c0_i32_1 = arith.constant 0 : i32
    return %c0_i32, %c0_i32_0 : i32, i32
  }
  func.func @transform_3(%arg0: i32) -> (i32, i32) {
    %c0_i32 = arith.constant 0 : i32
    %c0_i32_0 = arith.constant 0 : i32
    %c0_i32_1 = arith.constant 0 : i32
    return %c0_i32, %c0_i32_0 : i32, i32
  }
  func.func @transform_4(%arg0: i32) -> (i32, i32) {
    %c0_i32 = arith.constant 0 : i32
    %c0_i32_0 = arith.constant 0 : i32
    %c0_i32_1 = arith.constant 0 : i32
    return %c0_i32, %c0_i32_0 : i32, i32
  }
  func.func @transform_5(%arg0: i32) -> (i32, i32) {
    %c0_i32 = arith.constant 0 : i32
    %c0_i32_0 = arith.constant 0 : i32
    %c0_i32_1 = arith.constant 0 : i32
    return %c0_i32, %c0_i32_0 : i32, i32
  }
  func.func @transform_6(%arg0: i32) -> (i32, i32) {
    %c0_i32 = arith.constant 0 : i32
    %c0_i32_0 = arith.constant 0 : i32
    %c0_i32_1 = arith.constant 0 : i32
    return %c0_i32, %c0_i32_0 : i32, i32
  }
  func.func @transform_7(%arg0: i32) -> (i32, i32) {
    %c0_i32 = arith.constant 0 : i32
    %c0_i32_0 = arith.constant 0 : i32
    return %c0_i32, %arg0 : i32, i32
  }
}

</mosaic_0001>

<llo_original>
// kernel: user_embedding_forward.1
$region0: #{user_embedding_forward.1}
  #allocation0 [shape = 'u32[]', space=smem, size = 0x4, offset = 0x4, fixed_abs, tag = 'smem constant byte address 0x4 - core index']
  #allocation1 [shape = 'u32[144,128]{1,0:T(1,128)}', space=vmem, size = 0x12000, scoped, tag = 'internal scratch']
  %s0 = inlined_call_operand.vmem [shape: f32[8,16], index: 0, kind: input, shape index: {}]
  %s1 = inlined_call_operand.vmem [shape: f32[32,16], index: 1, kind: input, shape index: {}]
  %s2 = inlined_call_operand.vmem [shape: f32[32,1], index: 2, kind: input, shape index: {}]
  %s3 = inlined_call_operand.vmem [shape: f32[32,32], index: 3, kind: input, shape index: {}]
  %s4 = inlined_call_operand.vmem [shape: f32[32,1], index: 4, kind: input, shape index: {}]
  %s5 = inlined_call_operand.vmem [shape: f32[8,32], index: 5, kind: input, shape index: {}]
  %s6 = inlined_call_operand.vmem [shape: f32[8,1], index: 6, kind: input, shape index: {}]
  %s7 = inlined_call_operand.vmem [shape: f32[8,8], index: 7, kind: output, shape index: {}]
  %s8 = sld [smem:[#allocation0]]
  $region38: #{user_embedding_forward.1} parent=0
    _
  %s10 = ssub.s32 1, %s8
  %s11 = scalar_select 0, %s10, %s8
  // Predicated region
  $region2: #{user_embedding_forward.1} parent=0 // pred_check
    _
  $region3: #{user_embedding_forward.1} parent=0 // pred_check_branch
    %13 = sbr.rel (0) target = $region5
  $region4: #{user_embedding_forward.1} parent=0 // pred_region
    _
  $region5: #{user_embedding_forward.1} parent=0 // pred_fallthru
    _
  // Predicated region
  $region6: #{user_embedding_forward.1} parent=0 // pred_check
    _
  $region7: #{user_embedding_forward.1} parent=0 // pred_check_branch
    %15 = sbr.rel (0) target = $region9
  $region8: #{user_embedding_forward.1} parent=0 // pred_region
    _
  $region9: #{user_embedding_forward.1} parent=0 // pred_fallthru
    _
  // Predicated region
  $region10: #{user_embedding_forward.1} parent=0 // pred_check
    _
  $region11: #{user_embedding_forward.1} parent=0 // pred_check_branch
    %17 = sbr.rel (0) target = $region13
  $region12: #{user_embedding_forward.1} parent=0 // pred_region
    _
  $region13: #{user_embedding_forward.1} parent=0 // pred_fallthru
    _
  // Predicated region
  $region14: #{user_embedding_forward.1} parent=0 // pred_check
    _
  $region15: #{user_embedding_forward.1} parent=0 // pred_check_branch
    %19 = sbr.rel (0) target = $region17
  $region16: #{user_embedding_forward.1} parent=0 // pred_region
    _
  $region17: #{user_embedding_forward.1} parent=0 // pred_fallthru
    _
  // Predicated region
  $region18: #{user_embedding_forward.1} parent=0 // pred_check
    _
  $region19: #{user_embedding_forward.1} parent=0 // pred_check_branch
    %21 = sbr.rel (0) target = $region21
  $region20: #{user_embedding_forward.1} parent=0 // pred_region
    _
  $region21: #{user_embedding_forward.1} parent=0 // pred_fallthru
    _
  // Predicated region
  $region22: #{user_embedding_forward.1} parent=0 // pred_check
    _
  $region23: #{user_embedding_forward.1} parent=0 // pred_check_branch
    %23 = sbr.rel (0) target = $region25
  $region24: #{user_embedding_forward.1} parent=0 // pred_region
    _
  $region25: #{user_embedding_forward.1} parent=0 // pred_fallthru
    _
  // Predicated region
  $region26: #{user_embedding_forward.1} parent=0 // pred_check
    _
  $region27: #{user_embedding_forward.1} parent=0 // pred_check_branch
    %25 = sbr.rel (0) target = $region29
  $region28: #{user_embedding_forward.1} parent=0 // pred_region
    _
  $region29: #{user_embedding_forward.1} parent=0 // pred_fallthru
    _
  %v26 = vld [vmem:[%s0] sm:$0xff]
  %v27 = vld [vmem:[%s1] sm:$0xff]
  %v28 = vld [vmem:[%s1 + $0x8] sm:$0xff]
  %v29 = vld [vmem:[%s1 + $0x10] sm:$0xff]
  %v30 = vld [vmem:[%s1 + $0x18] sm:$0xff]
  %v31 = vld [vmem:[%s2] sm:$0xff]
  %v32 = vld [vmem:[%s2 + $0x8] sm:$0xff]
  %v33 = vld [vmem:[%s2 + $0x10] sm:$0xff]
  %v34 = vld [vmem:[%s2 + $0x18] sm:$0xff]
  %36 = vset.pattern.permute.xlu0 0
  %37 = vperm.xlu0 %36, %v31
  %v38 = vpop.permute.xlu0 %37
  %41 = vset.pattern.permute.xlu0 0
  %42 = vperm.xlu0 %41, %v32
  %v43 = vpop.permute.xlu0 %42
  %46 = vset.pattern.permute.xlu0 0
  %47 = vperm.xlu0 %46, %v33
  %v48 = vpop.permute.xlu0 %47
  %51 = vset.pattern.permute.xlu0 0
  %52 = vperm.xlu0 %51, %v34
  %v53 = vpop.permute.xlu0 %52
  %vm55 = vcmask 130048
  %v57 = vsel %vm55, %v27, 0
  %v60 = vsel %vm55, %v28, 0
  %v63 = vsel %vm55, %v29, 0
  %v66 = vsel %vm55, %v30, 0
  %v69 = vsel %vm55, %v26, 0
  %71 = vmatprep.subr.mxu0 0.0
  %72 = vmatpush1.xpose.msra.mxu0 %v69
  %73 = vmatprep.subr.mxu0 0.0
  %74 = vmatpush1.xpose.msra.mxu0 0.0
  %75 = vmatprep.subr.mxu0 0.0
  %76 = vmatpush1.xpose.msra.mxu0 0.0
  %77 = vmatprep.subr.mxu0 0.0
  %78 = vmatpush1.xpose.msra.mxu0 0.0
  %79 = vmatprep.subr.mxu0 0.0
  %80 = vmatpush1.xpose.msra.mxu0 0.0
  %81 = vmatprep.subr.mxu0 0.0
  %82 = vmatpush1.xpose.msra.mxu0 0.0
  %83 = vmatprep.subr.mxu0 0.0
  %84 = vmatpush1.xpose.msra.mxu0 0.0
  %85 = vmatprep.subr.mxu0 0.0
  %86 = vmatpush1.xpose.msra.mxu0 0.0
  %87 = vmatprep.subr.mxu0 0.0
  %88 = vmatpush1.xpose.msra.mxu0 0.0
  %89 = vmatprep.subr.mxu0 0.0
  %90 = vmatpush1.xpose.msra.mxu0 0.0
  %91 = vmatprep.subr.mxu0 0.0
  %92 = vmatpush1.xpose.msra.mxu0 0.0
  %93 = vmatprep.subr.mxu0 0.0
  %94 = vmatpush1.xpose.msra.mxu0 0.0
  %95 = vmatprep.subr.mxu0 0.0
  %96 = vmatpush1.xpose.msra.mxu0 0.0
  %97 = vmatprep.subr.mxu0 0.0
  %98 = vmatpush1.xpose.msra.mxu0 0.0
  %99 = vmatprep.subr.mxu0 0.0
  %100 = vmatpush1.xpose.msra.mxu0 0.0
  %101 = vmatprep.subr.mxu0 0.0
  %102 = vmatpush1.xpose.msra.mxu0 0.0
  %103 = vmatprep.subr.mxu0 0.0
  %104 = vmatpush1.xpose.msra.mxu0 0.0
  %105 = vmatprep.subr.mxu0 0.0
  %106 = vmatpush1.xpose.msra.mxu0 0.0
  %107 = vmatprep.subr.mxu0 0.0
  %108 = vmatpush1.xpose.msra.mxu0 0.0
  %109 = vmatprep.subr.mxu0 0.0
  %110 = vmatpush1.xpose.msra.mxu0 0.0
  %111 = vmatprep.subr.mxu0 0.0
  %112 = vmatpush1.xpose.msra.mxu0 0.0
  %113 = vmatprep.subr.mxu0 0.0
  %114 = vmatpush1.xpose.msra.mxu0 0.0
  %115 = vmatprep.subr.mxu0 0.0
  %116 = vmatpush1.xpose.msra.mxu0 0.0
  %117 = vmatprep.subr.mxu0 0.0
  %118 = vmatpush1.xpose.msra.mxu0 0.0
  %119 = vmatprep.subr.mxu0 0.0
  %120 = vmatpush1.xpose.msra.mxu0 0.0
  %121 = vmatprep.subr.mxu0 0.0
  %122 = vmatpush1.xpose.msra.mxu0 0.0
  %123 = vmatprep.subr.mxu0 0.0
  %124 = vmatpush1.xpose.msra.mxu0 0.0
  %125 = vmatprep.subr.mxu0 0.0
  %126 = vmatpush1.xpose.msra.mxu0 0.0
  %127 = vmatprep.subr.mxu0 0.0
  %128 = vmatpush1.xpose.msra.mxu0 0.0
  %129 = vmatprep.subr.mxu0 0.0
  %130 = vmatpush1.xpose.msra.mxu0 0.0
  %131 = vmatprep.subr.mxu0 0.0
  %132 = vmatpush1.xpose.msra.mxu0 0.0
  %133 = vmatprep.subr.mxu0 0.0
  %134 = vmatpush1.xpose.msra.mxu0 0.0
  %135 = vmatprep.mubr.f32.mxu0 0.0
  %136 = vmatmul.mubr.f32.gmra.mrb[0].mxu0 %v57
  %v137 = vpop.f32.mrb[0].mxu0
  %v138 = vadd.f32 %v38, %v137
  %v139 = vpop.f32.mrb[0].mxu0
  %140 = vmatprep.mubr.f32.mxu0 0.0
  %141 = vmatmul.mubr.f32.gmra.mrb[0].mxu0 %v60
  %v142 = vpop.f32.mrb[0].mxu0
  %v143 = vadd.f32 %v43, %v142
  %v144 = vpop.f32.mrb[0].mxu0
  %145 = vmatprep.mubr.f32.mxu0 0.0
  %146 = vmatmul.mubr.f32.gmra.mrb[0].mxu0 %v63
  %v147 = vpop.f32.mrb[0].mxu0
  %v148 = vadd.f32 %v48, %v147
  %v149 = vpop.f32.mrb[0].mxu0
  %150 = vmatprep.mubr.f32.mxu0 0.0
  %151 = vmatmul.mubr.f32.gmra.mrb[0].mxu0 %v66
  %v152 = vpop.f32.mrb[0].mxu0
  %v153 = vadd.f32 %v53, %v152
  %v154 = vpop.f32.mrb[0].mxu0
  %155 = vdwg.mxu0
  %v156 = vtanh.pop %v138
  %v157 = vtanh.pop %v143
  %v158 = vtanh.pop %v148
  %v159 = vtanh.pop %v153
  %v160 = vld [vmem:[%s3] sm:$0xff]
  %v161 = vld [vmem:[%s3 + $0x8] sm:$0xff]
  %v162 = vld [vmem:[%s3 + $0x10] sm:$0xff]
  %v163 = vld [vmem:[%s3 + $0x18] sm:$0xff]
  %v164 = vld [vmem:[%s4] sm:$0xff]
  %v165 = vld [vmem:[%s4 + $0x8] sm:$0xff]
  %v166 = vld [vmem:[%s4 + $0x10] sm:$0xff]
  %v167 = vld [vmem:[%s4 + $0x18] sm:$0xff]
  %169 = vset.pattern.permute.xlu0 0
  %170 = vperm.xlu0 %169, %v164
  %v171 = vpop.permute.xlu0 %170
  %174 = vset.pattern.permute.xlu0 0
  %175 = vperm.xlu0 %174, %v165
  %v176 = vpop.permute.xlu0 %175
  %179 = vset.pattern.permute.xlu0 0
  %180 = vperm.xlu0 %179, %v166
  %v181 = vpop.permute.xlu0 %180
  %184 = vset.pattern.permute.xlu0 0
  %185 = vperm.xlu0 %184, %v167
  %v186 = vpop.permute.xlu0 %185
  %vm188 = vcmask 261120
  %v190 = vsel %vm188, %v160, 0
  %v193 = vsel %vm188, %v161, 0
  %v196 = vsel %vm188, %v162, 0
  %v199 = vsel %vm188, %v163, 0
  %201 = vmatprep.subr.mxu0 0.0
  %202 = vmatpush1.msra.mxu0 %v156
  %203 = vmatprep.subr.mxu0 0.0
  %204 = vmatpush1.msra.mxu0 %v157
  %205 = vmatprep.subr.mxu0 0.0
  %206 = vmatpush1.msra.mxu0 %v158
  %207 = vmatprep.subr.mxu0 0.0
  %208 = vmatpush1.msra.mxu0 %v159
  %209 = vmatprep.subr.mxu0 0.0
  %210 = vmatpush1.msra.mxu0 0.0
  %211 = vmatprep.subr.mxu0 0.0
  %212 = vmatpush1.msra.mxu0 0.0
  %213 = vmatprep.subr.mxu0 0.0
  %214 = vmatpush1.msra.mxu0 0.0
  %215 = vmatprep.subr.mxu0 0.0
  %216 = vmatpush1.msra.mxu0 0.0
  %217 = vmatprep.subr.mxu0 0.0
  %218 = vmatpush1.msra.mxu0 0.0
  %219 = vmatprep.subr.mxu0 0.0
  %220 = vmatpush1.msra.mxu0 0.0
  %221 = vmatprep.subr.mxu0 0.0
  %222 = vmatpush1.msra.mxu0 0.0
  %223 = vmatprep.subr.mxu0 0.0
  %224 = vmatpush1.msra.mxu0 0.0
  %225 = vmatprep.subr.mxu0 0.0
  %226 = vmatpush1.msra.mxu0 0.0
  %227 = vmatprep.subr.mxu0 0.0
  %228 = vmatpush1.msra.mxu0 0.0
  %229 = vmatprep.subr.mxu0 0.0
  %230 = vmatpush1.msra.mxu0 0.0
  %231 = vmatprep.subr.mxu0 0.0
  %232 = vmatpush1.msra.mxu0 0.0
  %233 = vmatprep.subr.mxu0 0.0
  %234 = vmatpush1.msra.mxu0 0.0
  %235 = vmatprep.subr.mxu0 0.0
  %236 = vmatpush1.msra.mxu0 0.0
  %237 = vmatprep.subr.mxu0 0.0
  %238 = vmatpush1.msra.mxu0 0.0
  %239 = vmatprep.subr.mxu0 0.0
  %240 = vmatpush1.msra.mxu0 0.0
  %241 = vmatprep.subr.mxu0 0.0
  %242 = vmatpush1.msra.mxu0 0.0
  %243 = vmatprep.subr.mxu0 0.0
  %244 = vmatpush1.msra.mxu0 0.0
  %245 = vmatprep.subr.mxu0 0.0
  %246 = vmatpush1.msra.mxu0 0.0
  %247 = vmatprep.subr.mxu0 0.0
  %248 = vmatpush1.msra.mxu0 0.0
  %249 = vmatprep.subr.mxu0 0.0
  %250 = vmatpush1.msra.mxu0 0.0
  %251 = vmatprep.subr.mxu0 0.0
  %252 = vmatpush1.msra.mxu0 0.0
  %253 = vmatprep.subr.mxu0 0.0
  %254 = vmatpush1.msra.mxu0 0.0
  %255 = vmatprep.subr.mxu0 0.0
  %256 = vmatpush1.msra.mxu0 0.0
  %257 = vmatprep.subr.mxu0 0.0
  %258 = vmatpush1.msra.mxu0 0.0
  %259 = vmatprep.subr.mxu0 0.0
  %260 = vmatpush1.msra.mxu0 0.0
  %261 = vmatprep.subr.mxu0 0.0
  %262 = vmatpush1.msra.mxu0 0.0
  %263 = vmatprep.subr.mxu0 0.0
  %264 = vmatpush1.msra.mxu0 0.0
  %265 = vmatprep.mubr.f32.mxu0 0.0
  %266 = vmatmul.mubr.f32.gmra.mrb[0].mxu0 %v190
  %v267 = vpop.f32.mrb[0].mxu0
  %v268 = vadd.f32 %v171, %v267
  %v269 = vpop.f32.mrb[0].mxu0
  %270 = vmatprep.mubr.f32.mxu0 0.0
  %271 = vmatmul.mubr.f32.gmra.mrb[0].mxu0 %v193
  %v272 = vpop.f32.mrb[0].mxu0
  %v273 = vadd.f32 %v176, %v272
  %v274 = vpop.f32.mrb[0].mxu0
  %275 = vmatprep.mubr.f32.mxu0 0.0
  %276 = vmatmul.mubr.f32.gmra.mrb[0].mxu0 %v196
  %v277 = vpop.f32.mrb[0].mxu0
  %v278 = vadd.f32 %v181, %v277
  %v279 = vpop.f32.mrb[0].mxu0
  %280 = vmatprep.mubr.f32.mxu0 0.0
  %281 = vmatmul.mubr.f32.gmra.mrb[0].mxu0 %v199
  %v282 = vpop.f32.mrb[0].mxu0
  %v283 = vadd.f32 %v186, %v282
  %v284 = vpop.f32.mrb[0].mxu0
  %285 = vdwg.mxu0
  %v286 = vtanh.pop %v268
  %v287 = vtanh.pop %v273
  %v288 = vtanh.pop %v278
  %v289 = vtanh.pop %v283
  %v290 = vld [vmem:[%s5] sm:$0xff]
  %v291 = vld [vmem:[%s6] sm:$0xff]
  %293 = vset.pattern.permute.xlu0 0
  %294 = vperm.xlu0 %293, %v291
  %v295 = vpop.permute.xlu0 %294
  %v298 = vsel %vm188, %v290, 0
  %300 = vmatprep.subr.mxu0 0.0
  %301 = vmatpush1.msra.mxu0 %v286
  %302 = vmatprep.subr.mxu0 0.0
  %303 = vmatpush1.msra.mxu0 %v287
  %304 = vmatprep.subr.mxu0 0.0
  %305 = vmatpush1.msra.mxu0 %v288
  %306 = vmatprep.subr.mxu0 0.0
  %307 = vmatpush1.msra.mxu0 %v289
  %308 = vmatprep.subr.mxu0 0.0
  %309 = vmatpush1.msra.mxu0 0.0
  %310 = vmatprep.subr.mxu0 0.0
  %311 = vmatpush1.msra.mxu0 0.0
  %312 = vmatprep.subr.mxu0 0.0
  %313 = vmatpush1.msra.mxu0 0.0
  %314 = vmatprep.subr.mxu0 0.0
  %315 = vmatpush1.msra.mxu0 0.0
  %316 = vmatprep.subr.mxu0 0.0
  %317 = vmatpush1.msra.mxu0 0.0
  %318 = vmatprep.subr.mxu0 0.0
  %319 = vmatpush1.msra.mxu0 0.0
  %320 = vmatprep.subr.mxu0 0.0
  %321 = vmatpush1.msra.mxu0 0.0
  %322 = vmatprep.subr.mxu0 0.0
  %323 = vmatpush1.msra.mxu0 0.0
  %324 = vmatprep.subr.mxu0 0.0
  %325 = vmatpush1.msra.mxu0 0.0
  %326 = vmatprep.subr.mxu0 0.0
  %327 = vmatpush1.msra.mxu0 0.0
  %328 = vmatprep.subr.mxu0 0.0
  %329 = vmatpush1.msra.mxu0 0.0
  %330 = vmatprep.subr.mxu0 0.0
  %331 = vmatpush1.msra.mxu0 0.0
  %332 = vmatprep.subr.mxu0 0.0
  %333 = vmatpush1.msra.mxu0 0.0
  %334 = vmatprep.subr.mxu0 0.0
  %335 = vmatpush1.msra.mxu0 0.0
  %336 = vmatprep.subr.mxu0 0.0
  %337 = vmatpush1.msra.mxu0 0.0
  %338 = vmatprep.subr.mxu0 0.0
  %339 = vmatpush1.msra.mxu0 0.0
  %340 = vmatprep.subr.mxu0 0.0
  %341 = vmatpush1.msra.mxu0 0.0
  %342 = vmatprep.subr.mxu0 0.0
  %343 = vmatpush1.msra.mxu0 0.0
  %344 = vmatprep.subr.mxu0 0.0
  %345 = vmatpush1.msra.mxu0 0.0
  %346 = vmatprep.subr.mxu0 0.0
  %347 = vmatpush1.msra.mxu0 0.0
  %348 = vmatprep.subr.mxu0 0.0
  %349 = vmatpush1.msra.mxu0 0.0
  %350 = vmatprep.subr.mxu0 0.0
  %351 = vmatpush1.msra.mxu0 0.0
  %352 = vmatprep.subr.mxu0 0.0
  %353 = vmatpush1.msra.mxu0 0.0
  %354 = vmatprep.subr.mxu0 0.0
  %355 = vmatpush1.msra.mxu0 0.0
  %356 = vmatprep.subr.mxu0 0.0
  %357 = vmatpush1.msra.mxu0 0.0
  %358 = vmatprep.subr.mxu0 0.0
  %359 = vmatpush1.msra.mxu0 0.0
  %360 = vmatprep.subr.mxu0 0.0
  %361 = vmatpush1.msra.mxu0 0.0
  %362 = vmatprep.subr.mxu0 0.0
  %363 = vmatpush1.msra.mxu0 0.0
  %364 = vmatprep.mubr.f32.mxu0 0.0
  %365 = vmatmul.mubr.f32.gmra.mrb[0].mxu0 %v298
  %v366 = vpop.f32.mrb[0].mxu0
  %v367 = vadd.f32 %v295, %v366
  %v368 = vpop.f32.mrb[0].mxu0
  %369 = vdwg.mxu0
  %vm370 = vcmask 64512
  %371 = vst.msk [vmem:[%s7] sm:$0xff] %vm370, %v367
  // Predicated region
  $region30: #{user_embedding_forward.1} parent=0 // pred_check
    _
  $region31: #{user_embedding_forward.1} parent=0 // pred_check_branch
    %373 = sbr.rel (0) target = $region33
  $region32: #{user_embedding_forward.1} parent=0 // pred_region
    _
  $region33: #{user_embedding_forward.1} parent=0 // pred_fallthru
    _
  // Predicated region
  $region34: #{user_embedding_forward.1} parent=0 // pred_check
    _
  $region35: #{user_embedding_forward.1} parent=0 // pred_check_branch
    %375 = sbr.rel (0) target = $region37
  $region36: #{user_embedding_forward.1} parent=0 // pred_region
    _
  $region37: #{user_embedding_forward.1} parent=0 // pred_fallthru
    _

</llo_original>
